<compile_context>
chip_gen: v6e
topology: v6e:2x2x1
jax: 0.10.0
libtpu: 0.0.40
codegen_flags: <defaults>
</compile_context>

<pallas_src>
import jax
import jax.numpy as jnp
import numpy as np
from jax.experimental import pallas as pl
from jax.experimental.pallas import tpu as pltpu


# ------------------------------ weights / band matrices ------------------------------ #

def _gaussian_1d(ksize: int, sigma: float) -> np.ndarray:
    # Matches kornia.filters.kernels.gaussian.
    x = np.arange(ksize, dtype=np.float64) - ksize // 2
    if ksize % 2 == 0:
        x = x + 0.5
    g = np.exp(-(x ** 2) / (2.0 * float(sigma) ** 2))
    return g / g.sum()


def _reflect_index(i: int, n: int) -> int:
    # 'reflect' boundary (no edge repeat), same as np.pad / torch reflect padding.
    if n == 1:
        return 0
    period = 2 * (n - 1)
    i = i % period
    return i if i < n else period - i


def _reflect_blur_matrix(n: int, ksize: int, sigma: float) -> np.ndarray:
    """(n, n) band matrix M such that M @ x == 1D gaussian blur of x with reflect pad."""
    g = _gaussian_1d(ksize, sigma)
    pad = (ksize - 1) // 2
    m = np.zeros((n, n), np.float64)
    for r in range(n):
        for t in range(ksize):
            m[r, _reflect_index(r + t - pad, n)] += g[t]
    return m


# ------------------------------------ kernels ------------------------------------ #

def _blur_fused_kernel(g_ref, x_ref, o_ref):
    # g_ref: (D, D) bf16 combined blur operator (D = H*W).
    # x_ref / o_ref: (tbc, D) flattened planes (lane-dense last dim).
    xb = x_ref[...].astype(jnp.bfloat16)
    y = jnp.dot(xb, g_ref[...], preferred_element_type=jnp.float32)
    o_ref[...] = y.astype(o_ref.dtype)


def _blur_separable_kernel(mh_ref, mwt_ref, x_ref, o_ref):
    # mh_ref: (H, H) bf16 vertical operator; mwt_ref: (W, W) bf16 horizontal (pre-T).
    # x_ref / o_ref: (tbs, H, W) planes; tbs is small -> static (fully unrolled) loop.
    mh = mh_ref[...]
    mwt = mwt_ref[...]
    for i in range(x_ref.shape[0]):
        xb = x_ref[i].astype(jnp.bfloat16)
        t = jnp.dot(mh, xb, preferred_element_type=jnp.float32)
        o_ref[i] = jnp.dot(t.astype(jnp.bfloat16), mwt,
                           preferred_element_type=jnp.float32).astype(o_ref.dtype)


# ----------------------------------- tiling ------------------------------------ #

def _vmem_limit_bytes() -> int:
    """75% of per-core VMEM: ~96 MiB on v5e/v6e, ~48 MiB on v7x (safe fallback 48 MiB)."""
    cap = 64 << 20
    try:
        cap = int(pltpu.get_tpu_info().vmem_capacity_bytes)
    except Exception:
        pass
    return int(min(cap * 3 // 4, 112 << 20))


def _fused_planes_per_block(n_planes: int, row_bytes: int,
                            resident_bytes: int, vmem_limit: int) -> int:
    budget = vmem_limit - resident_bytes - (4 << 20)          # slack for compiler scratch
    tbc = max(1, budget // (6 * row_bytes))                   # in/out double-buffered + f32 acc
    if n_planes >= 16:
        # Force >= 2 grid steps so the 'parallel' axis shards across v7x's two TCs,
        # while keeping blocks a multiple of 8 (sublane alignment).
        tbc = min(tbc, pl.cdiv(n_planes, 2))
    if tbc >= n_planes:
        return int(n_planes)
    return int(min(max(8, (tbc // 8) * 8), n_planes))


# ----------------------------------- wrapper ------------------------------------ #

def gaussian_blur2d_pallas(x: jax.Array, kernel_size=(3, 3), sigma=(1.0, 1.0)) -> jax.Array:
    """x: (B, C, H, W). Gaussian blur with reflect border; same shape/dtype as x."""
    if isinstance(kernel_size, int):
        kernel_size = (kernel_size, kernel_size)
    kh, kw = kernel_size
    if isinstance(sigma, (int, float)):
        sigma = (float(sigma), float(sigma))
    sy, sx = sigma
    B, C, H, W = x.shape
    n_planes = B * C
    D = H * W
    vmem_limit = _vmem_limit_bytes()

    # TODO(synk): even kernel sizes use symmetric reflect taps here; kornia's
    # asymmetric padding for even kernels is not replicated (odd sizes match exactly).
    mh64 = _reflect_blur_matrix(H, kh, sy)     # (H, H)
    mw64 = _reflect_blur_matrix(W, kw, sx)     # (W, W)

    if D <= 2048:
        # ---- fused path: one lane-dense matmul per block against kron(Mh, Mw)^T ----
        g = jnp.asarray(np.kron(mh64, mw64).T.astype(np.float32)).astype(jnp.bfloat16)
        x2 = x.reshape(n_planes, D)                          # free reshape (no HBM copy)
        row_bytes = D * x.dtype.itemsize
        resident = 2 * D * D * 2                             # double-buffered bf16 G
        tbc = _fused_planes_per_block(n_planes, row_bytes, resident, vmem_limit)
        out2 = pl.pallas_call(
            _blur_fused_kernel,
            out_shape=jax.ShapeDtypeStruct((n_planes, D), x.dtype),
            grid_spec=pltpu.PrefetchScalarGridSpec(
                num_scalar_prefetch=0,
                grid=(pl.cdiv(n_planes, tbc),),
                in_specs=[
                    pl.BlockSpec((D, D), lambda n: (0, 0)),        # G (resident)
                    pl.BlockSpec((tbc, D), lambda n: (n, 0)),      # input planes
                ],
                out_specs=pl.BlockSpec((tbc, D), lambda n: (n, 0)),
            ),
            compiler_params=pltpu.CompilerParams(
                dimension_semantics=("parallel",),
                vmem_limit_bytes=vmem_limit,
            ),
        )(g, x2)
        return out2.reshape(B, C, H, W)

    # ---- separable fallback for larger spatial dims: Mh @ X @ Mw^T per plane ----
    # H, W are large enough here that plain 2D matmuls keep the MXU and lanes busy.
    # TODO(synk): very large images (H, W >~ 1024) would additionally need spatial
    # tiling with a ksize-wide halo to keep the dense (H,H)/(W,W) operators in VMEM.
    mh = jnp.asarray(mh64.astype(np.float32)).astype(jnp.bfloat16)
    mwt = jnp.asarray(mw64.T.astype(np.float32)).astype(jnp.bfloat16)
    x3 = x.reshape(n_planes, H, W)
    plane_bytes = H * W * x.dtype.itemsize
    resident = 2 * 2 * (H * H + W * W)                       # bf16 Mh + Mw^T, double-buffered
    budget = max(vmem_limit - resident - (8 << 20), 6 * plane_bytes)
    tbs = int(max(1, min(8, budget // (6 * plane_bytes), n_planes)))
    out3 = pl.pallas_call(
        _blur_separable_kernel,
        out_shape=jax.ShapeDtypeStruct((n_planes, H, W), x.dtype),
        grid_spec=pltpu.PrefetchScalarGridSpec(
            num_scalar_prefetch=0,
            grid=(pl.cdiv(n_planes, tbs),),
            in_specs=[
                pl.BlockSpec((H, H), lambda n: (0, 0)),            # Mh (resident)
                pl.BlockSpec((W, W), lambda n: (0, 0)),            # Mw^T (resident)
                pl.BlockSpec((tbs, H, W), lambda n: (n, 0, 0)),    # input planes
            ],
            out_specs=pl.BlockSpec((tbs, H, W), lambda n: (n, 0, 0)),
        ),
        compiler_params=pltpu.CompilerParams(
            dimension_semantics=("parallel",),
            vmem_limit_bytes=vmem_limit,
        ),
    )(mh, mwt, x3)
    return out3.reshape(B, C, H, W)


class GaussianBlur:
    """Pallas analogue of the PyTorch module (sigma fixed at (1, 1))."""

    def __init__(self, kernel_size):
        self.kernel_size = kernel_size

    def __call__(self, tensor):
        return gaussian_blur2d_pallas(tensor, self.kernel_size, (1.0, 1.0))


# ---------------------------------- reference ----------------------------------- #

def _np_reference_blur(x, kernel_size, sigma):
    """float64 numpy reference: reflect pad + 2D gaussian tap sum (kornia semantics)."""
    kh, kw = kernel_size
    ph, pw = (kh - 1) // 2, (kw - 1) // 2
    w2d = np.outer(_gaussian_1d(kh, sigma[0]), _gaussian_1d(kw, sigma[1]))
    xp = np.pad(np.asarray(x, np.float64), ((0, 0), (0, 0), (ph, ph), (pw, pw)),
                mode="reflect")
    H, W = x.shape[-2:]
    out = np.zeros(x.shape, np.float64)
    for i in range(kh):
        for j in range(kw):
            out += w2d[i, j] * xp[..., i:i + H, j:j + W]
    return out


if __name__ == "__main__":
    key = jax.random.PRNGKey(0)
    B, C, H, W = 2, 4, 16, 32          # non-square spatial dims catch H/W axis mixups
    kernel_size = (3, 3)
    sigma = (1.0, 1.0)
    x = jax.random.normal(key, (B, C, H, W), dtype=jnp.float32)

    # 1) Exact float64 gates: (a) the reflect-aware band matrices implement the same
    #    linear map as reflect-pad + 2D gaussian taps; (b) the fused kron(Mh, Mw)^T
    #    operator implements the same map on flattened planes.
    x_np = np.asarray(x, np.float64)
    ref = _np_reference_blur(x_np, kernel_size, sigma)
    mh64 = _reflect_blur_matrix(H, kernel_size[0], sigma[0])
    mw64 = _reflect_blur_matrix(W, kernel_size[1], sigma[1])
    band = np.einsum("ij,bcjk,lk->bcil", mh64, x_np, mw64)
    np.testing.assert_allclose(band, ref, rtol=1e-12, atol=1e-12)
    g64 = np.kron(mh64, mw64).T
    fused = (x_np.reshape(B * C, H * W) @ g64).reshape(B, C, H, W)
    np.testing.assert_allclose(fused, ref, rtol=1e-12, atol=1e-12)

    # 2) Run the Pallas kernel and compare against the reference.  Tolerance is sized
    #    for the bf16 MXU operands (the operator math itself is verified exactly
    #    above); any indexing/layout/reflect bug produces errors orders of magnitude
    #    larger than this.
    blur = GaussianBlur(kernel_size)
    y = jax.block_until_ready(blur(x))
    assert y.shape == x.shape and y.dtype == x.dtype
    np.testing.assert_allclose(np.asarray(y, np.float64), ref, rtol=2e-2, atol=5e-2)

    print("KERNEL_OK")
</pallas_src>

<mosaic_0001>
module attributes {stable_mosaic.version = 11 : i64} {
  func.func @_blur_fused_kernel(%arg0: i32, %arg1: memref<512x512xbf16, #tpu.memory_space<vmem>>, %arg2: memref<8x512xf32, #tpu.memory_space<vmem>>, %arg3: memref<8x512xf32, #tpu.memory_space<vmem>>) attributes {dimension_semantics = [#tpu.dimension_semantics<parallel>], iteration_bounds = array<i64: 1>, scalar_prefetch = 0 : i64, scratch_operands = 0 : i64, tpu.core_type = #tpu.core_type<tc>, window_params = [{pipeline_mode = #tpu.pipeline_mode<synchronous>, transform_indices = @transform_0, window_bounds = array<i64: 512, 512>}, {transform_indices = @transform_1, window_bounds = array<i64: 8, 512>}, {transform_indices = @transform_2, window_bounds = array<i64: 8, 512>}]} {
    %c0 = arith.constant 0 : index
    %c0_0 = arith.constant 0 : index
    %0 = vector.load %arg2[%c0, %c0_0] : memref<8x512xf32, #tpu.memory_space<vmem>>, vector<8x512xf32>
    %1 = arith.truncf %0 : vector<8x512xf32> to vector<8x512xbf16>
    %c0_1 = arith.constant 0 : index
    %c0_2 = arith.constant 0 : index
    %2 = vector.load %arg1[%c0_1, %c0_2] : memref<512x512xbf16, #tpu.memory_space<vmem>>, vector<512x512xbf16>
    %cst = arith.constant dense<0.000000e+00> : vector<8x512xf32>
    %3 = tpu.matmul %1, %2, %cst {dimension_numbers = #tpu.dot_dimension_numbers<[1], [0], [0], [1], [0, 0, 1, 1], [], []>} : vector<8x512xbf16>, vector<512x512xbf16>, vector<8x512xf32> -> vector<8x512xf32>
    %c0_3 = arith.constant 0 : index
    %c0_4 = arith.constant 0 : index
    %4 = vector.load %arg3[%c0_3, %c0_4] : memref<8x512xf32, #tpu.memory_space<vmem>>, vector<8x512xf32>
    tpu.vector_store %arg3[%c0_3, %c0_4], %3 {strides = array<i32>} : memref<8x512xf32, #tpu.memory_space<vmem>>, vector<8x512xf32>,
    return
  }
  func.func @transform_0(%arg0: i32) -> (i32, i32) {
    %c0_i32 = arith.constant 0 : i32
    %c0_i32_0 = arith.constant 0 : i32
    %c0_i32_1 = arith.constant 0 : i32
    return %c0_i32, %c0_i32_0 : i32, i32
  }
  func.func @transform_1(%arg0: i32) -> (i32, i32) {
    %c0_i32 = arith.constant 0 : i32
    %c0_i32_0 = arith.constant 0 : i32
    return %arg0, %c0_i32 : i32, i32
  }
  func.func @transform_2(%arg0: i32) -> (i32, i32) {
    %c0_i32 = arith.constant 0 : i32
    %c0_i32_0 = arith.constant 0 : i32
    return %arg0, %c0_i32 : i32, i32
  }
}

</mosaic_0001>

<llo_original>
// kernel: tpu_custom_call.1
$region0: #{tpu_custom_call.1}
  #allocation0 [shape = 'u32[]', space=smem, size = 0x4, offset = 0x4, fixed_abs, tag = 'smem constant byte address 0x4 - core index']
  #allocation1 [shape = 'u32[144,128]{1,0:T(1,128)}', space=vmem, size = 0x12000, scoped, tag = 'internal scratch']
  %s0 = inlined_call_operand.hbm [shape: bf16[512,512], index: 0, kind: input, shape index: {}]
  %s1 = inlined_call_operand.hbm [shape: f32[8,512], index: 1, kind: input, shape index: {}]
  %s2 = inlined_call_operand.hbm [shape: f32[8,512], index: 2, kind: output, shape index: {}]
  %s3 = sld [smem:[#allocation0]]
  $region26: #{tpu_custom_call.1} parent=0
    _
  %s5 = ssub.s32 1, %s3
  %s6 = scalar_select 0, %s5, %s3
  $region1: #{tpu_custom_call.1} parent=0
    #allocation2 [shape = 'u8[524288]{0}', space=vmem, size = 0x80000, scoped, tag = 'input window, operand 0, single buffered']
    #allocation3 [shape = 's32[1]{0}', space=sflag, size = 0x4, scoped, tag = 'scoped memory for tpu_custom_call.1']
    #allocation4 [shape = 's32[1]{0}', space=sflag, size = 0x4, scoped, tag = 'scoped memory for tpu_custom_call.1']
    #allocation5 [shape = 'u8[16384]{0}', space=vmem, size = 0x4000, scoped, tag = 'input window, operand 1, single buffered']
    #allocation6 [shape = 's32[1]{0}', space=sflag, size = 0x4, scoped, tag = 'scoped memory for tpu_custom_call.1']
    #allocation7 [shape = 'u8[16384]{0}', space=vmem, size = 0x4000, scoped, tag = 'output window, operand 0, single buffered']
    %7 = vsyncpa [#allocation3], 0
    %8 = vsyncpa [#allocation6], 0
    %9 = vsyncpa [#allocation4], 0
    // Predicated region
    $region2: #{tpu_custom_call.1} parent=1 // pred_check
      _
    $region3: #{tpu_custom_call.1} parent=1 // pred_check_branch
      %11 = sbr.rel (0) target = $region5
    $region4: #{tpu_custom_call.1} parent=1 // pred_region
      %s13 = ssub.s32 16384, 16384
      %14 = vsyncadd [#allocation3], %s13
      %s15 = sshll.u32 [#allocation2], 4
      %s16 = int_to_ptr.vmem [resolvable:$true] %s15
      %21 = dma.hbm_to_vmem [thread:$0]  %s0, 16384, %s16, [#allocation3], 256, 256, 16
    $region5: #{tpu_custom_call.1} parent=1 // pred_fallthru
      _
    // Predicated region
    $region6: #{tpu_custom_call.1} parent=1 // pred_check
      _
    $region7: #{tpu_custom_call.1} parent=1 // pred_check_branch
      %23 = sbr.rel (0) target = $region9
    $region8: #{tpu_custom_call.1} parent=1 // pred_region
      %s25 = ssub.s32 512, 512
      %26 = vsyncadd [#allocation6], %s25
      %s28 = sshll.u32 [#allocation5], 4
      %s29 = int_to_ptr.vmem [resolvable:$true] %s28
      %31 = dma.hbm_to_vmem [thread:$0]  %s1, 512, %s29, [#allocation6]
    $region9: #{tpu_custom_call.1} parent=1 // pred_fallthru
      _
    // Predicated region
    $region10: #{tpu_custom_call.1} parent=1 // pred_check
      _
    $region11: #{tpu_custom_call.1} parent=1 // pred_check_branch
      %33 = sbr.rel (0) target = $region13
    $region12: #{tpu_custom_call.1} parent=1 // pred_region
      %34 = dma.done [#allocation3], 16384
    $region13: #{tpu_custom_call.1} parent=1 // pred_fallthru
      _
    // Predicated region
    $region14: #{tpu_custom_call.1} parent=1 // pred_check
      _
    $region15: #{tpu_custom_call.1} parent=1 // pred_check_branch
      %36 = sbr.rel (0) target = $region17
    $region16: #{tpu_custom_call.1} parent=1 // pred_region
      %37 = dma.done [#allocation6], 512
    $region17: #{tpu_custom_call.1} parent=1 // pred_fallthru
      _
    %v38 = vld [vmem:[#allocation5] sm:$0xff]
    %v39 = vld [vmem:[#allocation5 + $0x8] sm:$0xff]
    %v40 = vld [vmem:[#allocation5 + $0x10] sm:$0xff]
    %v41 = vld [vmem:[#allocation5 + $0x18] sm:$0xff]
    %v42 = vpack.c.bf16 %v38, %v38
    %v43 = vpack.c.bf16 %v39, %v39
    %v44 = vpack.c.bf16 %v40, %v40
    %v45 = vpack.c.bf16 %v41, %v41
    %v46 = vld [vmem:[#allocation2] sm:$0xff]
    %v47 = vld [vmem:[#allocation2 + $0x8] sm:$0xff]
    %v48 = vld [vmem:[#allocation2 + $0x10] sm:$0xff]
    %v49 = vld [vmem:[#allocation2 + $0x18] sm:$0xff]
    %v50 = vld [vmem:[#allocation2 + $0x20] sm:$0xff]
    %v51 = vld [vmem:[#allocation2 + $0x28] sm:$0xff]
    %v52 = vld [vmem:[#allocation2 + $0x30] sm:$0xff]
    %v53 = vld [vmem:[#allocation2 + $0x38] sm:$0xff]
    %v54 = vld [vmem:[#allocation2 + $0x40] sm:$0xff]
    %v55 = vld [vmem:[#allocation2 + $0x48] sm:$0xff]
    %v56 = vld [vmem:[#allocation2 + $0x50] sm:$0xff]
    %v57 = vld [vmem:[#allocation2 + $0x58] sm:$0xff]
    %v58 = vld [vmem:[#allocation2 + $0x60] sm:$0xff]
    %v59 = vld [vmem:[#allocation2 + $0x68] sm:$0xff]
    %v60 = vld [vmem:[#allocation2 + $0x70] sm:$0xff]
    %v61 = vld [vmem:[#allocation2 + $0x78] sm:$0xff]
    %v62 = vld [vmem:[#allocation2 + $0x80] sm:$0xff]
    %v63 = vld [vmem:[#allocation2 + $0x88] sm:$0xff]
    %v64 = vld [vmem:[#allocation2 + $0x90] sm:$0xff]
    %v65 = vld [vmem:[#allocation2 + $0x98] sm:$0xff]
    %v66 = vld [vmem:[#allocation2 + $0xa0] sm:$0xff]
    %v67 = vld [vmem:[#allocation2 + $0xa8] sm:$0xff]
    %v68 = vld [vmem:[#allocation2 + $0xb0] sm:$0xff]
    %v69 = vld [vmem:[#allocation2 + $0xb8] sm:$0xff]
    %v70 = vld [vmem:[#allocation2 + $0xc0] sm:$0xff]
    %v71 = vld [vmem:[#allocation2 + $0xc8] sm:$0xff]
    %v72 = vld [vmem:[#allocation2 + $0xd0] sm:$0xff]
    %v73 = vld [vmem:[#allocation2 + $0xd8] sm:$0xff]
    %v74 = vld [vmem:[#allocation2 + $0xe0] sm:$0xff]
    %v75 = vld [vmem:[#allocation2 + $0xe8] sm:$0xff]
    %v76 = vld [vmem:[#allocation2 + $0xf0] sm:$0xff]
    %v77 = vld [vmem:[#allocation2 + $0xf8] sm:$0xff]
    %v78 = vld [vmem:[#allocation2 + $0x100] sm:$0xff]
    %v79 = vld [vmem:[#allocation2 + $0x108] sm:$0xff]
    %v80 = vld [vmem:[#allocation2 + $0x110] sm:$0xff]
    %v81 = vld [vmem:[#allocation2 + $0x118] sm:$0xff]
    %v82 = vld [vmem:[#allocation2 + $0x120] sm:$0xff]
    %v83 = vld [vmem:[#allocation2 + $0x128] sm:$0xff]
    %v84 = vld [vmem:[#allocation2 + $0x130] sm:$0xff]
    %v85 = vld [vmem:[#allocation2 + $0x138] sm:$0xff]
    %v86 = vld [vmem:[#allocation2 + $0x140] sm:$0xff]
    %v87 = vld [vmem:[#allocation2 + $0x148] sm:$0xff]
    %v88 = vld [vmem:[#allocation2 + $0x150] sm:$0xff]
    %v89 = vld [vmem:[#allocation2 + $0x158] sm:$0xff]
    %v90 = vld [vmem:[#allocation2 + $0x160] sm:$0xff]
    %v91 = vld [vmem:[#allocation2 + $0x168] sm:$0xff]
    %v92 = vld [vmem:[#allocation2 + $0x170] sm:$0xff]
    %v93 = vld [vmem:[#allocation2 + $0x178] sm:$0xff]
    %v94 = vld [vmem:[#allocation2 + $0x180] sm:$0xff]
    %v95 = vld [vmem:[#allocation2 + $0x188] sm:$0xff]
    %v96 = vld [vmem:[#allocation2 + $0x190] sm:$0xff]
    %v97 = vld [vmem:[#allocation2 + $0x198] sm:$0xff]
    %v98 = vld [vmem:[#allocation2 + $0x1a0] sm:$0xff]
    %v99 = vld [vmem:[#allocation2 + $0x1a8] sm:$0xff]
    %v100 = vld [vmem:[#allocation2 + $0x1b0] sm:$0xff]
    %v101 = vld [vmem:[#allocation2 + $0x1b8] sm:$0xff]
    %v102 = vld [vmem:[#allocation2 + $0x1c0] sm:$0xff]
    %v103 = vld [vmem:[#allocation2 + $0x1c8] sm:$0xff]
    %v104 = vld [vmem:[#allocation2 + $0x1d0] sm:$0xff]
    %v105 = vld [vmem:[#allocation2 + $0x1d8] sm:$0xff]
    %v106 = vld [vmem:[#allocation2 + $0x1e0] sm:$0xff]
    %v107 = vld [vmem:[#allocation2 + $0x1e8] sm:$0xff]
    %v108 = vld [vmem:[#allocation2 + $0x1f0] sm:$0xff]
    %v109 = vld [vmem:[#allocation2 + $0x1f8] sm:$0xff]
    %v110 = vld [vmem:[#allocation2 + $0x200] sm:$0xff]
    %v111 = vld [vmem:[#allocation2 + $0x208] sm:$0xff]
    %v112 = vld [vmem:[#allocation2 + $0x210] sm:$0xff]
    %v113 = vld [vmem:[#allocation2 + $0x218] sm:$0xff]
    %v114 = vld [vmem:[#allocation2 + $0x220] sm:$0xff]
    %v115 = vld [vmem:[#allocation2 + $0x228] sm:$0xff]
    %v116 = vld [vmem:[#allocation2 + $0x230] sm:$0xff]
    %v117 = vld [vmem:[#allocation2 + $0x238] sm:$0xff]
    %v118 = vld [vmem:[#allocation2 + $0x240] sm:$0xff]
    %v119 = vld [vmem:[#allocation2 + $0x248] sm:$0xff]
    %v120 = vld [vmem:[#allocation2 + $0x250] sm:$0xff]
    %v121 = vld [vmem:[#allocation2 + $0x258] sm:$0xff]
    %v122 = vld [vmem:[#allocation2 + $0x260] sm:$0xff]
    %v123 = vld [vmem:[#allocation2 + $0x268] sm:$0xff]
    %v124 = vld [vmem:[#allocation2 + $0x270] sm:$0xff]
    %v125 = vld [vmem:[#allocation2 + $0x278] sm:$0xff]
    %v126 = vld [vmem:[#allocation2 + $0x280] sm:$0xff]
    %v127 = vld [vmem:[#allocation2 + $0x288] sm:$0xff]
    %v128 = vld [vmem:[#allocation2 + $0x290] sm:$0xff]
    %v129 = vld [vmem:[#allocation2 + $0x298] sm:$0xff]
    %v130 = vld [vmem:[#allocation2 + $0x2a0] sm:$0xff]
    %v131 = vld [vmem:[#allocation2 + $0x2a8] sm:$0xff]
    %v132 = vld [vmem:[#allocation2 + $0x2b0] sm:$0xff]
    %v133 = vld [vmem:[#allocation2 + $0x2b8] sm:$0xff]
    %v134 = vld [vmem:[#allocation2 + $0x2c0] sm:$0xff]
    %v135 = vld [vmem:[#allocation2 + $0x2c8] sm:$0xff]
    %v136 = vld [vmem:[#allocation2 + $0x2d0] sm:$0xff]
    %v137 = vld [vmem:[#allocation2 + $0x2d8] sm:$0xff]
    %v138 = vld [vmem:[#allocation2 + $0x2e0] sm:$0xff]
    %v139 = vld [vmem:[#allocation2 + $0x2e8] sm:$0xff]
    %v140 = vld [vmem:[#allocation2 + $0x2f0] sm:$0xff]
    %v141 = vld [vmem:[#allocation2 + $0x2f8] sm:$0xff]
    %v142 = vld [vmem:[#allocation2 + $0x300] sm:$0xff]
    %v143 = vld [vmem:[#allocation2 + $0x308] sm:$0xff]
    %v144 = vld [vmem:[#allocation2 + $0x310] sm:$0xff]
    %v145 = vld [vmem:[#allocation2 + $0x318] sm:$0xff]
    %v146 = vld [vmem:[#allocation2 + $0x320] sm:$0xff]
    %v147 = vld [vmem:[#allocation2 + $0x328] sm:$0xff]
    %v148 = vld [vmem:[#allocation2 + $0x330] sm:$0xff]
    %v149 = vld [vmem:[#allocation2 + $0x338] sm:$0xff]
    %v150 = vld [vmem:[#allocation2 + $0x340] sm:$0xff]
    %v151 = vld [vmem:[#allocation2 + $0x348] sm:$0xff]
    %v152 = vld [vmem:[#allocation2 + $0x350] sm:$0xff]
    %v153 = vld [vmem:[#allocation2 + $0x358] sm:$0xff]
    %v154 = vld [vmem:[#allocation2 + $0x360] sm:$0xff]
    %v155 = vld [vmem:[#allocation2 + $0x368] sm:$0xff]
    %v156 = vld [vmem:[#allocation2 + $0x370] sm:$0xff]
    %v157 = vld [vmem:[#allocation2 + $0x378] sm:$0xff]
    %v158 = vld [vmem:[#allocation2 + $0x380] sm:$0xff]
    %v159 = vld [vmem:[#allocation2 + $0x388] sm:$0xff]
    %v160 = vld [vmem:[#allocation2 + $0x390] sm:$0xff]
    %v161 = vld [vmem:[#allocation2 + $0x398] sm:$0xff]
    %v162 = vld [vmem:[#allocation2 + $0x3a0] sm:$0xff]
    %v163 = vld [vmem:[#allocation2 + $0x3a8] sm:$0xff]
    %v164 = vld [vmem:[#allocation2 + $0x3b0] sm:$0xff]
    %v165 = vld [vmem:[#allocation2 + $0x3b8] sm:$0xff]
    %v166 = vld [vmem:[#allocation2 + $0x3c0] sm:$0xff]
    %v167 = vld [vmem:[#allocation2 + $0x3c8] sm:$0xff]
    %v168 = vld [vmem:[#allocation2 + $0x3d0] sm:$0xff]
    %v169 = vld [vmem:[#allocation2 + $0x3d8] sm:$0xff]
    %v170 = vld [vmem:[#allocation2 + $0x3e0] sm:$0xff]
    %v171 = vld [vmem:[#allocation2 + $0x3e8] sm:$0xff]
    %v172 = vld [vmem:[#allocation2 + $0x3f0] sm:$0xff]
    %v173 = vld [vmem:[#allocation2 + $0x3f8] sm:$0xff]
    %v302 = vunpack.c.l.b16 %v46
    %v303 = vunpack.c.h.b16 %v46
    %v304 = vunpack.c.l.b16 %v47
    %v305 = vunpack.c.h.b16 %v47
    %v306 = vunpack.c.l.b16 %v48
    %v307 = vunpack.c.h.b16 %v48
    %v308 = vunpack.c.l.b16 %v49
    %v309 = vunpack.c.h.b16 %v49
    %v310 = vunpack.c.l.b16 %v50
    %v311 = vunpack.c.h.b16 %v50
    %v312 = vunpack.c.l.b16 %v51
    %v313 = vunpack.c.h.b16 %v51
    %v314 = vunpack.c.l.b16 %v52
    %v315 = vunpack.c.h.b16 %v52
    %v316 = vunpack.c.l.b16 %v53
    %v317 = vunpack.c.h.b16 %v53
    %v318 = vunpack.c.l.b16 %v54
    %v319 = vunpack.c.h.b16 %v54
    %v320 = vunpack.c.l.b16 %v55
    %v321 = vunpack.c.h.b16 %v55
    %v322 = vunpack.c.l.b16 %v56
    %v323 = vunpack.c.h.b16 %v56
    %v324 = vunpack.c.l.b16 %v57
    %v325 = vunpack.c.h.b16 %v57
    %v326 = vunpack.c.l.b16 %v58
    %v327 = vunpack.c.h.b16 %v58
    %v328 = vunpack.c.l.b16 %v59
    %v329 = vunpack.c.h.b16 %v59
    %v330 = vunpack.c.l.b16 %v60
    %v331 = vunpack.c.h.b16 %v60
    %v332 = vunpack.c.l.b16 %v61
    %v333 = vunpack.c.h.b16 %v61
    %v334 = vunpack.c.l.b16 %v62
    %v335 = vunpack.c.h.b16 %v62
    %v336 = vunpack.c.l.b16 %v63
    %v337 = vunpack.c.h.b16 %v63
    %v338 = vunpack.c.l.b16 %v64
    %v339 = vunpack.c.h.b16 %v64
    %v340 = vunpack.c.l.b16 %v65
    %v341 = vunpack.c.h.b16 %v65
    %v342 = vunpack.c.l.b16 %v66
    %v343 = vunpack.c.h.b16 %v66
    %v344 = vunpack.c.l.b16 %v67
    %v345 = vunpack.c.h.b16 %v67
    %v346 = vunpack.c.l.b16 %v68
    %v347 = vunpack.c.h.b16 %v68
    %v348 = vunpack.c.l.b16 %v69
    %v349 = vunpack.c.h.b16 %v69
    %v350 = vunpack.c.l.b16 %v70
    %v351 = vunpack.c.h.b16 %v70
    %v352 = vunpack.c.l.b16 %v71
    %v353 = vunpack.c.h.b16 %v71
    %v354 = vunpack.c.l.b16 %v72
    %v355 = vunpack.c.h.b16 %v72
    %v356 = vunpack.c.l.b16 %v73
    %v357 = vunpack.c.h.b16 %v73
    %v358 = vunpack.c.l.b16 %v74
    %v359 = vunpack.c.h.b16 %v74
    %v360 = vunpack.c.l.b16 %v75
    %v361 = vunpack.c.h.b16 %v75
    %v362 = vunpack.c.l.b16 %v76
    %v363 = vunpack.c.h.b16 %v76
    %v364 = vunpack.c.l.b16 %v77
    %v365 = vunpack.c.h.b16 %v77
    %v366 = vunpack.c.l.b16 %v78
    %v367 = vunpack.c.h.b16 %v78
    %v368 = vunpack.c.l.b16 %v79
    %v369 = vunpack.c.h.b16 %v79
    %v370 = vunpack.c.l.b16 %v80
    %v371 = vunpack.c.h.b16 %v80
    %v372 = vunpack.c.l.b16 %v81
    %v373 = vunpack.c.h.b16 %v81
    %v374 = vunpack.c.l.b16 %v82
    %v375 = vunpack.c.h.b16 %v82
    %v376 = vunpack.c.l.b16 %v83
    %v377 = vunpack.c.h.b16 %v83
    %v378 = vunpack.c.l.b16 %v84
    %v379 = vunpack.c.h.b16 %v84
    %v380 = vunpack.c.l.b16 %v85
    %v381 = vunpack.c.h.b16 %v85
    %v382 = vunpack.c.l.b16 %v86
    %v383 = vunpack.c.h.b16 %v86
    %v384 = vunpack.c.l.b16 %v87
    %v385 = vunpack.c.h.b16 %v87
    %v386 = vunpack.c.l.b16 %v88
    %v387 = vunpack.c.h.b16 %v88
    %v388 = vunpack.c.l.b16 %v89
    %v389 = vunpack.c.h.b16 %v89
    %v390 = vunpack.c.l.b16 %v90
    %v391 = vunpack.c.h.b16 %v90
    %v392 = vunpack.c.l.b16 %v91
    %v393 = vunpack.c.h.b16 %v91
    %v394 = vunpack.c.l.b16 %v92
    %v395 = vunpack.c.h.b16 %v92
    %v396 = vunpack.c.l.b16 %v93
    %v397 = vunpack.c.h.b16 %v93
    %v398 = vunpack.c.l.b16 %v94
    %v399 = vunpack.c.h.b16 %v94
    %v400 = vunpack.c.l.b16 %v95
    %v401 = vunpack.c.h.b16 %v95
    %v402 = vunpack.c.l.b16 %v96
    %v403 = vunpack.c.h.b16 %v96
    %v404 = vunpack.c.l.b16 %v97
    %v405 = vunpack.c.h.b16 %v97
    %v406 = vunpack.c.l.b16 %v98
    %v407 = vunpack.c.h.b16 %v98
    %v408 = vunpack.c.l.b16 %v99
    %v409 = vunpack.c.h.b16 %v99
    %v410 = vunpack.c.l.b16 %v100
    %v411 = vunpack.c.h.b16 %v100
    %v412 = vunpack.c.l.b16 %v101
    %v413 = vunpack.c.h.b16 %v101
    %v414 = vunpack.c.l.b16 %v102
    %v415 = vunpack.c.h.b16 %v102
    %v416 = vunpack.c.l.b16 %v103
    %v417 = vunpack.c.h.b16 %v103
    %v418 = vunpack.c.l.b16 %v104
    %v419 = vunpack.c.h.b16 %v104
    %v420 = vunpack.c.l.b16 %v105
    %v421 = vunpack.c.h.b16 %v105
    %v422 = vunpack.c.l.b16 %v106
    %v423 = vunpack.c.h.b16 %v106
    %v424 = vunpack.c.l.b16 %v107
    %v425 = vunpack.c.h.b16 %v107
    %v426 = vunpack.c.l.b16 %v108
    %v427 = vunpack.c.h.b16 %v108
    %v428 = vunpack.c.l.b16 %v109
    %v429 = vunpack.c.h.b16 %v109
    %v430 = vunpack.c.l.b16 %v110
    %v431 = vunpack.c.h.b16 %v110
    %v432 = vunpack.c.l.b16 %v111
    %v433 = vunpack.c.h.b16 %v111
    %v434 = vunpack.c.l.b16 %v112
    %v435 = vunpack.c.h.b16 %v112
    %v436 = vunpack.c.l.b16 %v113
    %v437 = vunpack.c.h.b16 %v113
    %v438 = vunpack.c.l.b16 %v114
    %v439 = vunpack.c.h.b16 %v114
    %v440 = vunpack.c.l.b16 %v115
    %v441 = vunpack.c.h.b16 %v115
    %v442 = vunpack.c.l.b16 %v116
    %v443 = vunpack.c.h.b16 %v116
    %v444 = vunpack.c.l.b16 %v117
    %v445 = vunpack.c.h.b16 %v117
    %v446 = vunpack.c.l.b16 %v118
    %v447 = vunpack.c.h.b16 %v118
    %v448 = vunpack.c.l.b16 %v119
    %v449 = vunpack.c.h.b16 %v119
    %v450 = vunpack.c.l.b16 %v120
    %v451 = vunpack.c.h.b16 %v120
    %v452 = vunpack.c.l.b16 %v121
    %v453 = vunpack.c.h.b16 %v121
    %v454 = vunpack.c.l.b16 %v122
    %v455 = vunpack.c.h.b16 %v122
    %v456 = vunpack.c.l.b16 %v123
    %v457 = vunpack.c.h.b16 %v123
    %v458 = vunpack.c.l.b16 %v124
    %v459 = vunpack.c.h.b16 %v124
    %v460 = vunpack.c.l.b16 %v125
    %v461 = vunpack.c.h.b16 %v125
    %v462 = vunpack.c.l.b16 %v126
    %v463 = vunpack.c.h.b16 %v126
    %v464 = vunpack.c.l.b16 %v127
    %v465 = vunpack.c.h.b16 %v127
    %v466 = vunpack.c.l.b16 %v128
    %v467 = vunpack.c.h.b16 %v128
    %v468 = vunpack.c.l.b16 %v129
    %v469 = vunpack.c.h.b16 %v129
    %v470 = vunpack.c.l.b16 %v130
    %v471 = vunpack.c.h.b16 %v130
    %v472 = vunpack.c.l.b16 %v131
    %v473 = vunpack.c.h.b16 %v131
    %v474 = vunpack.c.l.b16 %v132
    %v475 = vunpack.c.h.b16 %v132
    %v476 = vunpack.c.l.b16 %v133
    %v477 = vunpack.c.h.b16 %v133
    %v478 = vunpack.c.l.b16 %v134
    %v479 = vunpack.c.h.b16 %v134
    %v480 = vunpack.c.l.b16 %v135
    %v481 = vunpack.c.h.b16 %v135
    %v482 = vunpack.c.l.b16 %v136
    %v483 = vunpack.c.h.b16 %v136
    %v484 = vunpack.c.l.b16 %v137
    %v485 = vunpack.c.h.b16 %v137
    %v486 = vunpack.c.l.b16 %v138
    %v487 = vunpack.c.h.b16 %v138
    %v488 = vunpack.c.l.b16 %v139
    %v489 = vunpack.c.h.b16 %v139
    %v490 = vunpack.c.l.b16 %v140
    %v491 = vunpack.c.h.b16 %v140
    %v492 = vunpack.c.l.b16 %v141
    %v493 = vunpack.c.h.b16 %v141
    %v494 = vunpack.c.l.b16 %v142
    %v495 = vunpack.c.h.b16 %v142
    %v496 = vunpack.c.l.b16 %v143
    %v497 = vunpack.c.h.b16 %v143
    %v498 = vunpack.c.l.b16 %v144
    %v499 = vunpack.c.h.b16 %v144
    %v500 = vunpack.c.l.b16 %v145
    %v501 = vunpack.c.h.b16 %v145
    %v502 = vunpack.c.l.b16 %v146
    %v503 = vunpack.c.h.b16 %v146
    %v504 = vunpack.c.l.b16 %v147
    %v505 = vunpack.c.h.b16 %v147
    %v506 = vunpack.c.l.b16 %v148
    %v507 = vunpack.c.h.b16 %v148
    %v508 = vunpack.c.l.b16 %v149
    %v509 = vunpack.c.h.b16 %v149
    %v510 = vunpack.c.l.b16 %v150
    %v511 = vunpack.c.h.b16 %v150
    %v512 = vunpack.c.l.b16 %v151
    %v513 = vunpack.c.h.b16 %v151
    %v514 = vunpack.c.l.b16 %v152
    %v515 = vunpack.c.h.b16 %v152
    %v516 = vunpack.c.l.b16 %v153
    %v517 = vunpack.c.h.b16 %v153
    %v518 = vunpack.c.l.b16 %v154
    %v519 = vunpack.c.h.b16 %v154
    %v520 = vunpack.c.l.b16 %v155
    %v521 = vunpack.c.h.b16 %v155
    %v522 = vunpack.c.l.b16 %v156
    %v523 = vunpack.c.h.b16 %v156
    %v524 = vunpack.c.l.b16 %v157
    %v525 = vunpack.c.h.b16 %v157
    %v526 = vunpack.c.l.b16 %v158
    %v527 = vunpack.c.h.b16 %v158
    %v528 = vunpack.c.l.b16 %v159
    %v529 = vunpack.c.h.b16 %v159
    %v530 = vunpack.c.l.b16 %v160
    %v531 = vunpack.c.h.b16 %v160
    %v532 = vunpack.c.l.b16 %v161
    %v533 = vunpack.c.h.b16 %v161
    %v534 = vunpack.c.l.b16 %v162
    %v535 = vunpack.c.h.b16 %v162
    %v536 = vunpack.c.l.b16 %v163
    %v537 = vunpack.c.h.b16 %v163
    %v538 = vunpack.c.l.b16 %v164
    %v539 = vunpack.c.h.b16 %v164
    %v540 = vunpack.c.l.b16 %v165
    %v541 = vunpack.c.h.b16 %v165
    %v542 = vunpack.c.l.b16 %v166
    %v543 = vunpack.c.h.b16 %v166
    %v544 = vunpack.c.l.b16 %v167
    %v545 = vunpack.c.h.b16 %v167
    %v546 = vunpack.c.l.b16 %v168
    %v547 = vunpack.c.h.b16 %v168
    %v548 = vunpack.c.l.b16 %v169
    %v549 = vunpack.c.h.b16 %v169
    %v550 = vunpack.c.l.b16 %v170
    %v551 = vunpack.c.h.b16 %v170
    %v552 = vunpack.c.l.b16 %v171
    %v553 = vunpack.c.h.b16 %v171
    %v554 = vunpack.c.l.b16 %v172
    %v555 = vunpack.c.h.b16 %v172
    %v556 = vunpack.c.l.b16 %v173
    %v557 = vunpack.c.h.b16 %v173
    %v558 = vpack.c.b16 %v306, %v302
    %v559 = vpack.c.b16 %v307, %v303
    %v560 = vpack.c.b16 %v308, %v304
    %v561 = vpack.c.b16 %v309, %v305
    %v562 = vpack.c.b16 %v314, %v310
    %v563 = vpack.c.b16 %v315, %v311
    %v564 = vpack.c.b16 %v316, %v312
    %v565 = vpack.c.b16 %v317, %v313
    %v566 = vpack.c.b16 %v322, %v318
    %v567 = vpack.c.b16 %v323, %v319
    %v568 = vpack.c.b16 %v324, %v320
    %v569 = vpack.c.b16 %v325, %v321
    %v570 = vpack.c.b16 %v330, %v326
    %v571 = vpack.c.b16 %v331, %v327
    %v572 = vpack.c.b16 %v332, %v328
    %v573 = vpack.c.b16 %v333, %v329
    %v574 = vpack.c.b16 %v338, %v334
    %v575 = vpack.c.b16 %v339, %v335
    %v576 = vpack.c.b16 %v340, %v336
    %v577 = vpack.c.b16 %v341, %v337
    %v578 = vpack.c.b16 %v346, %v342
    %v579 = vpack.c.b16 %v347, %v343
    %v580 = vpack.c.b16 %v348, %v344
    %v581 = vpack.c.b16 %v349, %v345
    %v582 = vpack.c.b16 %v354, %v350
    %v583 = vpack.c.b16 %v355, %v351
    %v584 = vpack.c.b16 %v356, %v352
    %v585 = vpack.c.b16 %v357, %v353
    %v586 = vpack.c.b16 %v362, %v358
    %v587 = vpack.c.b16 %v363, %v359
    %v588 = vpack.c.b16 %v364, %v360
    %v589 = vpack.c.b16 %v365, %v361
    %v590 = vpack.c.b16 %v370, %v366
    %v591 = vpack.c.b16 %v371, %v367
    %v592 = vpack.c.b16 %v372, %v368
    %v593 = vpack.c.b16 %v373, %v369
    %v594 = vpack.c.b16 %v378, %v374
    %v595 = vpack.c.b16 %v379, %v375
    %v596 = vpack.c.b16 %v380, %v376
    %v597 = vpack.c.b16 %v381, %v377
    %v598 = vpack.c.b16 %v386, %v382
    %v599 = vpack.c.b16 %v387, %v383
    %v600 = vpack.c.b16 %v388, %v384
    %v601 = vpack.c.b16 %v389, %v385
    %v602 = vpack.c.b16 %v394, %v390
    %v603 = vpack.c.b16 %v395, %v391
    %v604 = vpack.c.b16 %v396, %v392
    %v605 = vpack.c.b16 %v397, %v393
    %v606 = vpack.c.b16 %v402, %v398
    %v607 = vpack.c.b16 %v403, %v399
    %v608 = vpack.c.b16 %v404, %v400
    %v609 = vpack.c.b16 %v405, %v401
    %v610 = vpack.c.b16 %v410, %v406
    %v611 = vpack.c.b16 %v411, %v407
    %v612 = vpack.c.b16 %v412, %v408
    %v613 = vpack.c.b16 %v413, %v409
    %v614 = vpack.c.b16 %v418, %v414
    %v615 = vpack.c.b16 %v419, %v415
    %v616 = vpack.c.b16 %v420, %v416
    %v617 = vpack.c.b16 %v421, %v417
    %v618 = vpack.c.b16 %v426, %v422
    %v619 = vpack.c.b16 %v427, %v423
    %v620 = vpack.c.b16 %v428, %v424
    %v621 = vpack.c.b16 %v429, %v425
    %v622 = vpack.c.b16 %v434, %v430
    %v623 = vpack.c.b16 %v435, %v431
    %v624 = vpack.c.b16 %v436, %v432
    %v625 = vpack.c.b16 %v437, %v433
    %v626 = vpack.c.b16 %v442, %v438
    %v627 = vpack.c.b16 %v443, %v439
    %v628 = vpack.c.b16 %v444, %v440
    %v629 = vpack.c.b16 %v445, %v441
    %v630 = vpack.c.b16 %v450, %v446
    %v631 = vpack.c.b16 %v451, %v447
    %v632 = vpack.c.b16 %v452, %v448
    %v633 = vpack.c.b16 %v453, %v449
    %v634 = vpack.c.b16 %v458, %v454
    %v635 = vpack.c.b16 %v459, %v455
    %v636 = vpack.c.b16 %v460, %v456
    %v637 = vpack.c.b16 %v461, %v457
    %v638 = vpack.c.b16 %v466, %v462
    %v639 = vpack.c.b16 %v467, %v463
    %v640 = vpack.c.b16 %v468, %v464
    %v641 = vpack.c.b16 %v469, %v465
    %v642 = vpack.c.b16 %v474, %v470
    %v643 = vpack.c.b16 %v475, %v471
    %v644 = vpack.c.b16 %v476, %v472
    %v645 = vpack.c.b16 %v477, %v473
    %v646 = vpack.c.b16 %v482, %v478
    %v647 = vpack.c.b16 %v483, %v479
    %v648 = vpack.c.b16 %v484, %v480
    %v649 = vpack.c.b16 %v485, %v481
    %v650 = vpack.c.b16 %v490, %v486
    %v651 = vpack.c.b16 %v491, %v487
    %v652 = vpack.c.b16 %v492, %v488
    %v653 = vpack.c.b16 %v493, %v489
    %v654 = vpack.c.b16 %v498, %v494
    %v655 = vpack.c.b16 %v499, %v495
    %v656 = vpack.c.b16 %v500, %v496
    %v657 = vpack.c.b16 %v501, %v497
    %v658 = vpack.c.b16 %v506, %v502
    %v659 = vpack.c.b16 %v507, %v503
    %v660 = vpack.c.b16 %v508, %v504
    %v661 = vpack.c.b16 %v509, %v505
    %v662 = vpack.c.b16 %v514, %v510
    %v663 = vpack.c.b16 %v515, %v511
    %v664 = vpack.c.b16 %v516, %v512
    %v665 = vpack.c.b16 %v517, %v513
    %v666 = vpack.c.b16 %v522, %v518
    %v667 = vpack.c.b16 %v523, %v519
    %v668 = vpack.c.b16 %v524, %v520
    %v669 = vpack.c.b16 %v525, %v521
    %v670 = vpack.c.b16 %v530, %v526
    %v671 = vpack.c.b16 %v531, %v527
    %v672 = vpack.c.b16 %v532, %v528
    %v673 = vpack.c.b16 %v533, %v529
    %v674 = vpack.c.b16 %v538, %v534
    %v675 = vpack.c.b16 %v539, %v535
    %v676 = vpack.c.b16 %v540, %v536
    %v677 = vpack.c.b16 %v541, %v537
    %v678 = vpack.c.b16 %v546, %v542
    %v679 = vpack.c.b16 %v547, %v543
    %v680 = vpack.c.b16 %v548, %v544
    %v681 = vpack.c.b16 %v549, %v545
    %v682 = vpack.c.b16 %v554, %v550
    %v683 = vpack.c.b16 %v555, %v551
    %v684 = vpack.c.b16 %v556, %v552
    %v685 = vpack.c.b16 %v557, %v553
    %814 = vmatprep.subr.bf16.mxu0 %v587
    %815 = vmatpush1.bf16.msra.mxu0 %v586
    %816 = vmatprep.subr.bf16.mxu0 %v583
    %817 = vmatpush1.bf16.msra.mxu0 %v582
    %818 = vmatprep.subr.bf16.mxu0 %v579
    %819 = vmatpush1.bf16.msra.mxu0 %v578
    %820 = vmatprep.subr.bf16.mxu0 %v575
    %821 = vmatpush1.bf16.msra.mxu0 %v574
    %822 = vmatprep.subr.bf16.mxu0 %v571
    %823 = vmatpush1.bf16.msra.mxu0 %v570
    %824 = vmatprep.subr.bf16.mxu0 %v567
    %825 = vmatpush1.bf16.msra.mxu0 %v566
    %826 = vmatprep.subr.bf16.mxu0 %v563
    %827 = vmatpush1.bf16.msra.mxu0 %v562
    %828 = vmatprep.subr.bf16.mxu0 %v559
    %829 = vmatpush1.bf16.msra.mxu0 %v558
    %830 = vmatprep.subr.bf16.mxu0 %v619
    %831 = vmatpush2.bf16.msra.mxu0 %v618
    %832 = vmatprep.subr.bf16.mxu0 %v615
    %833 = vmatpush2.bf16.msra.mxu0 %v614
    %834 = vmatprep.subr.bf16.mxu0 %v611
    %835 = vmatpush2.bf16.msra.mxu0 %v610
    %836 = vmatprep.subr.bf16.mxu0 %v607
    %837 = vmatpush2.bf16.msra.mxu0 %v606
    %838 = vmatprep.subr.bf16.mxu0 %v603
    %839 = vmatpush2.bf16.msra.mxu0 %v602
    %840 = vmatprep.subr.bf16.mxu0 %v599
    %841 = vmatpush2.bf16.msra.mxu0 %v598
    %842 = vmatprep.subr.bf16.mxu0 %v595
    %843 = vmatpush2.bf16.msra.mxu0 %v594
    %844 = vmatprep.subr.bf16.mxu0 %v591
    %845 = vmatpush2.bf16.msra.mxu0 %v590
    %846 = vmatprep.mubr.bf16.mxu0 %v43
    %847 = vmatmul.mubr.bf16.gmra.mxu0 %v42
    %v848 = vpop.f32.mrf.mxu0
    %v849 = vadd.f32 0.0, %v848
    %v850 = vpop.f32.mrf.mxu0
    %v851 = vadd.f32 0.0, %v850
    %v852 = vpop.f32.mrf.mxu0
    %v853 = vpop.f32.mrf.mxu0
    %854 = vdwg.mxu0
    %855 = vmatprep.subr.bf16.mxu0 %v651
    %856 = vmatpush1.bf16.msra.mxu0 %v650
    %857 = vmatprep.subr.bf16.mxu0 %v647
    %858 = vmatpush1.bf16.msra.mxu0 %v646
    %859 = vmatprep.subr.bf16.mxu0 %v643
    %860 = vmatpush1.bf16.msra.mxu0 %v642
    %861 = vmatprep.subr.bf16.mxu0 %v639
    %862 = vmatpush1.bf16.msra.mxu0 %v638
    %863 = vmatprep.subr.bf16.mxu0 %v635
    %864 = vmatpush1.bf16.msra.mxu0 %v634
    %865 = vmatprep.subr.bf16.mxu0 %v631
    %866 = vmatpush1.bf16.msra.mxu0 %v630
    %867 = vmatprep.subr.bf16.mxu0 %v627
    %868 = vmatpush1.bf16.msra.mxu0 %v626
    %869 = vmatprep.subr.bf16.mxu0 %v623
    %870 = vmatpush1.bf16.msra.mxu0 %v622
    %871 = vmatprep.subr.bf16.mxu0 %v683
    %872 = vmatpush2.bf16.msra.mxu0 %v682
    %873 = vmatprep.subr.bf16.mxu0 %v679
    %874 = vmatpush2.bf16.msra.mxu0 %v678
    %875 = vmatprep.subr.bf16.mxu0 %v675
    %876 = vmatpush2.bf16.msra.mxu0 %v674
    %877 = vmatprep.subr.bf16.mxu0 %v671
    %878 = vmatpush2.bf16.msra.mxu0 %v670
    %879 = vmatprep.subr.bf16.mxu0 %v667
    %880 = vmatpush2.bf16.msra.mxu0 %v666
    %881 = vmatprep.subr.bf16.mxu0 %v663
    %882 = vmatpush2.bf16.msra.mxu0 %v662
    %883 = vmatprep.subr.bf16.mxu0 %v659
    %884 = vmatpush2.bf16.msra.mxu0 %v658
    %885 = vmatprep.subr.bf16.mxu0 %v655
    %886 = vmatpush2.bf16.msra.mxu0 %v654
    %887 = vmatprep.mubr.bf16.mxu0 %v45
    %888 = vmatmul.mubr.bf16.gmra.mxu0 %v44
    %v889 = vpop.f32.mrf.mxu0
    %v890 = vadd.f32 %v849, %v889
    %v891 = vpop.f32.mrf.mxu0
    %v892 = vadd.f32 %v851, %v891
    %v893 = vpop.f32.mrf.mxu0
    %v894 = vpop.f32.mrf.mxu0
    %895 = vdwg.mxu0
    %896 = vmatprep.subr.bf16.mxu0 %v589
    %897 = vmatpush1.bf16.msra.mxu0 %v588
    %898 = vmatprep.subr.bf16.mxu0 %v585
    %899 = vmatpush1.bf16.msra.mxu0 %v584
    %900 = vmatprep.subr.bf16.mxu0 %v581
    %901 = vmatpush1.bf16.msra.mxu0 %v580
    %902 = vmatprep.subr.bf16.mxu0 %v577
    %903 = vmatpush1.bf16.msra.mxu0 %v576
    %904 = vmatprep.subr.bf16.mxu0 %v573
    %905 = vmatpush1.bf16.msra.mxu0 %v572
    %906 = vmatprep.subr.bf16.mxu0 %v569
    %907 = vmatpush1.bf16.msra.mxu0 %v568
    %908 = vmatprep.subr.bf16.mxu0 %v565
    %909 = vmatpush1.bf16.msra.mxu0 %v564
    %910 = vmatprep.subr.bf16.mxu0 %v561
    %911 = vmatpush1.bf16.msra.mxu0 %v560
    %912 = vmatprep.subr.bf16.mxu0 %v621
    %913 = vmatpush2.bf16.msra.mxu0 %v620
    %914 = vmatprep.subr.bf16.mxu0 %v617
    %915 = vmatpush2.bf16.msra.mxu0 %v616
    %916 = vmatprep.subr.bf16.mxu0 %v613
    %917 = vmatpush2.bf16.msra.mxu0 %v612
    %918 = vmatprep.subr.bf16.mxu0 %v609
    %919 = vmatpush2.bf16.msra.mxu0 %v608
    %920 = vmatprep.subr.bf16.mxu0 %v605
    %921 = vmatpush2.bf16.msra.mxu0 %v604
    %922 = vmatprep.subr.bf16.mxu0 %v601
    %923 = vmatpush2.bf16.msra.mxu0 %v600
    %924 = vmatprep.subr.bf16.mxu0 %v597
    %925 = vmatpush2.bf16.msra.mxu0 %v596
    %926 = vmatprep.subr.bf16.mxu0 %v593
    %927 = vmatpush2.bf16.msra.mxu0 %v592
    %928 = vmatprep.mubr.bf16.mxu0 %v43
    %929 = vmatmul.mubr.bf16.gmra.mxu0 %v42
    %v930 = vpop.f32.mrf.mxu0
    %v931 = vadd.f32 0.0, %v930
    %v932 = vpop.f32.mrf.mxu0
    %v933 = vadd.f32 0.0, %v932
    %v934 = vpop.f32.mrf.mxu0
    %v935 = vpop.f32.mrf.mxu0
    %936 = vdwg.mxu0
    %937 = vmatprep.subr.bf16.mxu0 %v653
    %938 = vmatpush1.bf16.msra.mxu0 %v652
    %939 = vmatprep.subr.bf16.mxu0 %v649
    %940 = vmatpush1.bf16.msra.mxu0 %v648
    %941 = vmatprep.subr.bf16.mxu0 %v645
    %942 = vmatpush1.bf16.msra.mxu0 %v644
    %943 = vmatprep.subr.bf16.mxu0 %v641
    %944 = vmatpush1.bf16.msra.mxu0 %v640
    %945 = vmatprep.subr.bf16.mxu0 %v637
    %946 = vmatpush1.bf16.msra.mxu0 %v636
    %947 = vmatprep.subr.bf16.mxu0 %v633
    %948 = vmatpush1.bf16.msra.mxu0 %v632
    %949 = vmatprep.subr.bf16.mxu0 %v629
    %950 = vmatpush1.bf16.msra.mxu0 %v628
    %951 = vmatprep.subr.bf16.mxu0 %v625
    %952 = vmatpush1.bf16.msra.mxu0 %v624
    %953 = vmatprep.subr.bf16.mxu0 %v685
    %954 = vmatpush2.bf16.msra.mxu0 %v684
    %955 = vmatprep.subr.bf16.mxu0 %v681
    %956 = vmatpush2.bf16.msra.mxu0 %v680
    %957 = vmatprep.subr.bf16.mxu0 %v677
    %958 = vmatpush2.bf16.msra.mxu0 %v676
    %959 = vmatprep.subr.bf16.mxu0 %v673
    %960 = vmatpush2.bf16.msra.mxu0 %v672
    %961 = vmatprep.subr.bf16.mxu0 %v669
    %962 = vmatpush2.bf16.msra.mxu0 %v668
    %963 = vmatprep.subr.bf16.mxu0 %v665
    %964 = vmatpush2.bf16.msra.mxu0 %v664
    %965 = vmatprep.subr.bf16.mxu0 %v661
    %966 = vmatpush2.bf16.msra.mxu0 %v660
    %967 = vmatprep.subr.bf16.mxu0 %v657
    %968 = vmatpush2.bf16.msra.mxu0 %v656
    %969 = vmatprep.mubr.bf16.mxu0 %v45
    %970 = vmatmul.mubr.bf16.gmra.mxu0 %v44
    %v971 = vpop.f32.mrf.mxu0
    %v972 = vadd.f32 %v931, %v971
    %v973 = vpop.f32.mrf.mxu0
    %v974 = vadd.f32 %v933, %v973
    %v975 = vpop.f32.mrf.mxu0
    %v976 = vpop.f32.mrf.mxu0
    %977 = vdwg.mxu0
    %978 = vst [vmem:[#allocation7] sm:$0xff] %v890
    %979 = vst [vmem:[#allocation7 + $0x8] sm:$0xff] %v892
    %980 = vst [vmem:[#allocation7 + $0x10] sm:$0xff] %v972
    %981 = vst [vmem:[#allocation7 + $0x18] sm:$0xff] %v974
    // Predicated region
    $region18: #{tpu_custom_call.1} parent=1 // pred_check
      _
    $region19: #{tpu_custom_call.1} parent=1 // pred_check_branch
      %983 = sbr.rel (0) target = $region21
    $region20: #{tpu_custom_call.1} parent=1 // pred_region
      %s985 = ssub.s32 512, 512
      %986 = vsyncadd [#allocation4], %s985
      %s988 = sshll.u32 [#allocation7], 4
      %s989 = int_to_ptr.vmem [resolvable:$true] %s988
      %991 = dma.vmem_to_hbm [thread:$0]  %s989, 512, %s2, [#allocation4]
    $region21: #{tpu_custom_call.1} parent=1 // pred_fallthru
      _
    // Predicated region
    $region22: #{tpu_custom_call.1} parent=1 // pred_check
      _
    $region23: #{tpu_custom_call.1} parent=1 // pred_check_branch
      %993 = sbr.rel (0) target = $region25
    $region24: #{tpu_custom_call.1} parent=1 // pred_region
      %994 = dma.done [#allocation4], 512
    $region25: #{tpu_custom_call.1} parent=1 // pred_fallthru
      _
    %995 = vsyncpa [#allocation3], 1
    %996 = vsyncpa [#allocation6], 1
    %997 = vsyncpa [#allocation4], 1

</llo_original>
